<compile_context>
chip_gen: v5e
topology: v5e:2x2
jax: 0.10.0
libtpu: 0.0.40
codegen_flags: <defaults>
</compile_context>

<pallas_src>
import functools

import jax
import jax.numpy as jnp
from jax import lax
from jax.experimental import pallas as pl
from jax.experimental.pallas import tpu as pltpu


def _complex_conv1x1_kernel(x_ref, wr_ref, wi_ref, be_ref, bo_ref, o_ref):
    """Fused complex 1x1 conv on the interleaved (real, imag) lane layout.

    x_ref  : (Cin,  T)   activations; lane 2k = real(pix k), lane 2k+1 = imag(pix k)
    wr_ref : (Cout, Cin) real-conv weight
    wi_ref : (Cout, Cin) imag-conv weight
    be_ref : (Cout, 1)   bias for even (real) lanes  = b_r - b_i
    bo_ref : (Cout, 1)   bias for odd  (imag) lanes  = b_r + b_i
    o_ref  : (Cout, T)   output, same interleaved lane layout
    """
    x = x_ref[...]
    t = x.shape[1]

    # Signed adjacent-lane (real<->imag) pair swap:
    #   even lane 2k   <- -x[2k+1]   (= -imag_k)
    #   odd  lane 2k+1 <- +x[2k]     (= +real_k)
    # pltpu.roll follows jnp.roll semantics: roll(x, 1)[l] = x[l-1] and
    # roll(x, t-1)[l] = x[l+1].  The circular-wrap lanes are selected away by
    # the parity mask (tile width and tile offsets are even), so tile
    # boundaries are safe.
    nxt = pltpu.roll(x, shift=t - 1, axis=1)      # x[l+1]
    prv = pltpu.roll(x, shift=1, axis=1)          # x[l-1]
    even_x = (lax.broadcasted_iota(jnp.int32, x.shape, 1) & 1) == 0
    y = jnp.where(even_x, -nxt, prv)

    # Two MXU dots give the full complex product on the interleaved layout:
    #   even lanes: Wr@xr - Wi@xi ; odd lanes: Wr@xi + Wi@xr
    acc = jnp.dot(wr_ref[...], x, preferred_element_type=jnp.float32)
    acc = acc + jnp.dot(wi_ref[...], y, preferred_element_type=jnp.float32)

    even_o = (lax.broadcasted_iota(jnp.int32, acc.shape, 1) & 1) == 0
    acc = acc + jnp.where(even_o, be_ref[...], bo_ref[...])

    o_ref[...] = acc.astype(o_ref.dtype)


def _round_up(x, m):
    return ((x + m - 1) // m) * m


@functools.partial(jax.jit, static_argnames=("vmem_block_budget",))
def complex_conv2d_encoder(inputs, w_real, b_real, w_imag, b_imag,
                           vmem_block_budget=10 * 1024 * 1024):
    """Forward pass of ComplexConv2d_Encoder (default kernel_size=(1,1) path).

    inputs : (N, Cin, H, W, 2) float32 (PyTorch NCHW + trailing real/imag dim)
    w_real/w_imag : (Cout, Cin, 1, 1)  (PyTorch Conv2d weight layout)
    b_real/b_imag : (Cout,)
    returns: (N, Cout, H, W, 2)
    """
    N, Cin, H, W, two = inputs.shape
    assert two == 2, "trailing dim must be (real, imag)"
    Cout = w_real.shape[0]
    L = 2 * H * W                      # interleaved lane extent

    # Free reshape (same memory layout): lanes are [r0, i0, r1, i1, ...].
    x_il = inputs.reshape(N, Cin, L)

    wr = w_real[:, :, 0, 0]            # (Cout, Cin)
    wi = w_imag[:, :, 0, 0]
    b_even = (b_real - b_imag).reshape(Cout, 1)   # bias on real lanes
    b_odd = (b_real + b_imag).reshape(Cout, 1)    # bias on imag lanes

    # --- lane-tile selection -------------------------------------------------
    # Live pipelined VMEM ~= 2 (double buffer) * 4 B * tile * (Cin + Cout);
    # keep that under ~10 MiB (safe even on v7x's 64 MiB VMEM / 32 MiB scoped)
    # while letting small-channel configs take very wide tiles so each grid
    # step moves ~MiB of HBM and amortizes the ~0.35 us per-step overhead.
    bytes_per_lane = 2 * 4 * (Cin + Cout)
    cap = (vmem_block_budget // bytes_per_lane) // 256 * 256
    cap = max(256, min(cap, 32768))                   # multiple of 256 (lane-dense, even pairs)
    tile = L if L <= cap else cap
    # v7x has 2 TensorCores sharded over parallel grid axes: when N == 1 make
    # sure the spatial axis still provides >= 2 grid steps.
    if N == 1 and tile >= L and L > 256:
        tile = max(128, _round_up(-(-L // 2), 128))   # multiple of 128, < L
    grid = (N, pl.cdiv(L, tile))

    # NOTE: keeping Cout a multiple of 8 keeps the (Cout, tile) stores unmasked.
    out_il = pl.pallas_call(
        _complex_conv1x1_kernel,
        out_shape=jax.ShapeDtypeStruct((N, Cout, L), inputs.dtype),
        grid_spec=pltpu.PrefetchScalarGridSpec(
            num_scalar_prefetch=0,
            grid=grid,
            in_specs=[
                pl.BlockSpec((None, Cin, tile), lambda n, t: (n, 0, t)),  # X (interleaved)
                pl.BlockSpec((Cout, Cin), lambda n, t: (0, 0)),           # Wr (resident)
                pl.BlockSpec((Cout, Cin), lambda n, t: (0, 0)),           # Wi (resident)
                pl.BlockSpec((Cout, 1), lambda n, t: (0, 0)),             # bias even
                pl.BlockSpec((Cout, 1), lambda n, t: (0, 0)),             # bias odd
            ],
            out_specs=pl.BlockSpec((None, Cout, tile), lambda n, t: (n, 0, t)),
        ),
        compiler_params=pltpu.CompilerParams(
            dimension_semantics=("parallel", "parallel"),
            vmem_limit_bytes=32 * 1024 * 1024),
        cost_estimate=pl.CostEstimate(
            flops=8 * N * H * W * Cin * Cout,
            transcendentals=0,
            bytes_accessed=4 * (N * Cin * L + N * Cout * L
                                + 2 * Cout * Cin + 2 * Cout)),
    )(x_il, wr, wi, b_even, b_odd)

    # Free reshape back to (N, Cout, H, W, 2) — no extra HBM pass.  Matches
    # `out[..., :W]` (a no-op for 1x1/stride1/pad0) + torch.stack([...], -1).
    return out_il.reshape(N, Cout, H, W, 2)


def _reference(inputs, w_real, b_real, w_imag, b_imag):
    """Pure-JAX reference of the PyTorch forward (1x1 conv case)."""
    x_real = inputs[..., 0]
    x_imag = inputs[..., 1]
    wr = w_real[:, :, 0, 0]   # (Cout, Cin)
    wi = w_imag[:, :, 0, 0]

    def conv1x1(x, w, b):
        y = jnp.einsum("nchw,oc->nohw", x, w)
        return y + b[None, :, None, None]

    out_real = conv1x1(x_real, wr, b_real) - conv1x1(x_imag, wi, b_imag)
    out_imag = conv1x1(x_imag, wr, b_real) + conv1x1(x_real, wi, b_imag)
    return jnp.stack([out_real, out_imag], axis=-1)


if __name__ == "__main__":
    # Small shapes consistent with the module: batch=2, in_channels=4,
    # out_channels=8, spatial 16x16, complex-last dim of size 2.
    N, Cin, Cout, H, W = 2, 4, 8, 16, 16

    key = jax.random.PRNGKey(0)
    k_x, k_wr, k_br, k_wi, k_bi = jax.random.split(key, 5)

    inputs = jax.random.normal(k_x, (N, Cin, H, W, 2), dtype=jnp.float32)

    # Deterministic "Conv2d" parameters (PyTorch layout: (Cout, Cin, 1, 1)).
    w_real = jax.random.normal(k_wr, (Cout, Cin, 1, 1), dtype=jnp.float32) * 0.1
    b_real = jax.random.normal(k_br, (Cout,), dtype=jnp.float32) * 0.1
    w_imag = jax.random.normal(k_wi, (Cout, Cin, 1, 1), dtype=jnp.float32) * 0.1
    b_imag = jax.random.normal(k_bi, (Cout,), dtype=jnp.float32) * 0.1

    out = complex_conv2d_encoder(inputs, w_real, b_real, w_imag, b_imag)
    out = jax.block_until_ready(out)

    ref = _reference(inputs, w_real, b_real, w_imag, b_imag)
    assert out.shape == (N, Cout, H, W, 2), out.shape
    assert jnp.allclose(out, ref, atol=1e-5, rtol=1e-5), "mismatch vs reference"

    print("KERNEL_OK")
</pallas_src>

<mosaic_0001>
module attributes {stable_mosaic.version = 11 : i64} {
  func.func @_complex_conv1x1_kernel(%arg0: i32, %arg1: i32, %arg2: memref<1x4x512xf32, #tpu.memory_space<vmem>>, %arg3: memref<8x4xf32, #tpu.memory_space<vmem>>, %arg4: memref<8x4xf32, #tpu.memory_space<vmem>>, %arg5: memref<8x1xf32, #tpu.memory_space<vmem>>, %arg6: memref<8x1xf32, #tpu.memory_space<vmem>>, %arg7: memref<1x8x512xf32, #tpu.memory_space<vmem>>) attributes {dimension_semantics = [#tpu.dimension_semantics<parallel>, #tpu.dimension_semantics<parallel>], iteration_bounds = array<i64: 2, 1>, scalar_prefetch = 0 : i64, scratch_operands = 0 : i64, tpu.core_type = #tpu.core_type<tc>, window_params = [{transform_indices = @transform_0, window_bounds = array<i64: 1, 4, 512>}, {pipeline_mode = #tpu.pipeline_mode<synchronous>, transform_indices = @transform_1, window_bounds = array<i64: 8, 4>}, {pipeline_mode = #tpu.pipeline_mode<synchronous>, transform_indices = @transform_2, window_bounds = array<i64: 8, 4>}, {pipeline_mode = #tpu.pipeline_mode<synchronous>, transform_indices = @transform_3, window_bounds = array<i64: 8, 1>}, {pipeline_mode = #tpu.pipeline_mode<synchronous>, transform_indices = @transform_4, window_bounds = array<i64: 8, 1>}, {transform_indices = @transform_5, window_bounds = array<i64: 1, 8, 512>}]} {
    %c0 = arith.constant 0 : index
    %c0_0 = arith.constant 0 : index
    %c0_1 = arith.constant 0 : index
    %0 = vector.load %arg2[%c0, %c0_0, %c0_1] : memref<1x4x512xf32, #tpu.memory_space<vmem>>, vector<1x4x512xf32>
    %1 = vector.shape_cast %0 : vector<1x4x512xf32> to vector<4x512xf32>
    %c511_i32 = arith.constant 511 : i32
    %2 = tpu.dynamic_rotate %1 by %c511_i32 dim 1 : vector<4x512xf32>, i32 -> vector<4x512xf32>
    %c1_i32 = arith.constant 1 : i32
    %3 = tpu.dynamic_rotate %1 by %c1_i32 dim 1 : vector<4x512xf32>, i32 -> vector<4x512xf32>
    %4 = tpu.iota {dimensions = array<i32: 1>} : vector<4x512xi32>
    %c1_i32_2 = arith.constant 1 : i32
    %5 = vector.broadcast %c1_i32_2 : i32 to vector<4x512xi32>
    %6 = arith.andi %4, %5 : vector<4x512xi32>
    %c0_i32 = arith.constant 0 : i32
    %7 = vector.broadcast %c0_i32 : i32 to vector<4x512xi32>
    %8 = arith.cmpi eq, %6, %7 : vector<4x512xi32>
    %cst = arith.constant 0.000000e+00 : f32
    %9 = vector.broadcast %cst : f32 to vector<4x512xf32>
    %10 = arith.subf %9, %2 : vector<4x512xf32>
    %11 = arith.select %8, %10, %3 : vector<4x512xi1>, vector<4x512xf32>
    %c0_3 = arith.constant 0 : index
    %c0_4 = arith.constant 0 : index
    %12 = vector.load %arg3[%c0_3, %c0_4] : memref<8x4xf32, #tpu.memory_space<vmem>>, vector<8x4xf32>
    %cst_5 = arith.constant dense<0.000000e+00> : vector<8x512xf32>
    %13 = tpu.matmul %12, %1, %cst_5 {dimension_numbers = #tpu.dot_dimension_numbers<[1], [0], [0], [1], [0, 0, 1, 1], [], []>} : vector<8x4xf32>, vector<4x512xf32>, vector<8x512xf32> -> vector<8x512xf32>
    %c0_6 = arith.constant 0 : index
    %c0_7 = arith.constant 0 : index
    %14 = vector.load %arg4[%c0_6, %c0_7] : memref<8x4xf32, #tpu.memory_space<vmem>>, vector<8x4xf32>
    %cst_8 = arith.constant dense<0.000000e+00> : vector<8x512xf32>
    %15 = tpu.matmul %14, %11, %cst_8 {dimension_numbers = #tpu.dot_dimension_numbers<[1], [0], [0], [1], [0, 0, 1, 1], [], []>} : vector<8x4xf32>, vector<4x512xf32>, vector<8x512xf32> -> vector<8x512xf32>
    %16 = arith.addf %13, %15 : vector<8x512xf32>
    %17 = tpu.iota {dimensions = array<i32: 1>} : vector<8x512xi32>
    %c1_i32_9 = arith.constant 1 : i32
    %18 = vector.broadcast %c1_i32_9 : i32 to vector<8x512xi32>
    %19 = arith.andi %17, %18 : vector<8x512xi32>
    %c0_i32_10 = arith.constant 0 : i32
    %20 = vector.broadcast %c0_i32_10 : i32 to vector<8x512xi32>
    %21 = arith.cmpi eq, %19, %20 : vector<8x512xi32>
    %c0_11 = arith.constant 0 : index
    %c0_12 = arith.constant 0 : index
    %22 = vector.load %arg5[%c0_11, %c0_12] : memref<8x1xf32, #tpu.memory_space<vmem>>, vector<8x1xf32>
    %c0_13 = arith.constant 0 : index
    %c0_14 = arith.constant 0 : index
    %23 = vector.load %arg6[%c0_13, %c0_14] : memref<8x1xf32, #tpu.memory_space<vmem>>, vector<8x1xf32>
    %24 = vector.shape_cast %22 : vector<8x1xf32> to vector<8x1xf32>
    %25 = vector.broadcast %24 : vector<8x1xf32> to vector<8x512xf32>
    %26 = vector.shape_cast %23 : vector<8x1xf32> to vector<8x1xf32>
    %27 = vector.broadcast %26 : vector<8x1xf32> to vector<8x512xf32>
    %28 = arith.select %21, %25, %27 : vector<8x512xi1>, vector<8x512xf32>
    %29 = arith.addf %16, %28 : vector<8x512xf32>
    %c0_15 = arith.constant 0 : index
    %c0_16 = arith.constant 0 : index
    %c0_17 = arith.constant 0 : index
    %30 = vector.load %arg7[%c0_15, %c0_16, %c0_17] : memref<1x8x512xf32, #tpu.memory_space<vmem>>, vector<1x8x512xf32>
    %31 = vector.shape_cast %30 : vector<1x8x512xf32> to vector<8x512xf32>
    %32 = vector.shape_cast %29 : vector<8x512xf32> to vector<1x8x512xf32>
    tpu.vector_store %arg7[%c0_15, %c0_16, %c0_17], %32 {strides = array<i32>} : memref<1x8x512xf32, #tpu.memory_space<vmem>>, vector<1x8x512xf32>,
    return
  }
  func.func @transform_0(%arg0: i32, %arg1: i32) -> (i32, i32, i32) {
    %c0_i32 = arith.constant 0 : i32
    %c0_i32_0 = arith.constant 0 : i32
    return %arg0, %c0_i32, %arg1 : i32, i32, i32
  }
  func.func @transform_1(%arg0: i32, %arg1: i32) -> (i32, i32) {
    %c0_i32 = arith.constant 0 : i32
    %c0_i32_0 = arith.constant 0 : i32
    %c0_i32_1 = arith.constant 0 : i32
    return %c0_i32, %c0_i32_0 : i32, i32
  }
  func.func @transform_2(%arg0: i32, %arg1: i32) -> (i32, i32) {
    %c0_i32 = arith.constant 0 : i32
    %c0_i32_0 = arith.constant 0 : i32
    %c0_i32_1 = arith.constant 0 : i32
    return %c0_i32, %c0_i32_0 : i32, i32
  }
  func.func @transform_3(%arg0: i32, %arg1: i32) -> (i32, i32) {
    %c0_i32 = arith.constant 0 : i32
    %c0_i32_0 = arith.constant 0 : i32
    %c0_i32_1 = arith.constant 0 : i32
    return %c0_i32, %c0_i32_0 : i32, i32
  }
  func.func @transform_4(%arg0: i32, %arg1: i32) -> (i32, i32) {
    %c0_i32 = arith.constant 0 : i32
    %c0_i32_0 = arith.constant 0 : i32
    %c0_i32_1 = arith.constant 0 : i32
    return %c0_i32, %c0_i32_0 : i32, i32
  }
  func.func @transform_5(%arg0: i32, %arg1: i32) -> (i32, i32, i32) {
    %c0_i32 = arith.constant 0 : i32
    %c0_i32_0 = arith.constant 0 : i32
    return %arg0, %c0_i32, %arg1 : i32, i32, i32
  }
}

</mosaic_0001>

<llo_original>
// kernel: complex_conv2d_encoder.1
$region0: #{complex_conv2d_encoder.1}
  #allocation0 [shape = 'u32[]', space=smem, size = 0x4, offset = 0x4, fixed_abs, tag = 'smem constant byte address 0x4 - core index']
  #allocation1 [shape = 'u32[72,128]{1,0:T(1,128)}', space=vmem, size = 0x9000, scoped, tag = 'internal scratch']
  %s0 = inlined_call_operand.vmem [shape: f32[2,4,512], index: 0, kind: input, shape index: {}]
  %s1 = inlined_call_operand.vmem [shape: f32[8,4], index: 1, kind: input, shape index: {}]
  %s2 = inlined_call_operand.vmem [shape: f32[8,4], index: 2, kind: input, shape index: {}]
  %s3 = inlined_call_operand.vmem [shape: f32[8,1], index: 3, kind: input, shape index: {}]
  %s4 = inlined_call_operand.vmem [shape: f32[8,1], index: 4, kind: input, shape index: {}]
  %s5 = inlined_call_operand.vmem [shape: f32[2,8,512], index: 5, kind: output, shape index: {}]
  %s6 = sld [smem:[#allocation0]]
  $region53: #{complex_conv2d_encoder.1} parent=0
    _
  %s8 = ssub.s32 1, %s6
  %s9 = scalar_select 0, %s8, %s6
  loop: start=0, step=1, limit=4
  $region2: #{complex_conv2d_encoder.1} parent=0 // loop_pre_header
    _
  $region3: #{complex_conv2d_encoder.1} parent=0 // loop_header
    %s11 = sphi 0, %s15
    %p12 = scmp.ge.s32.totalorder %s11, 4
    %s18 = sphi 0, %s30
    %s19 = sphi 0, %s26
    %s20 = sphi 0, %s18
    %s21 = sphi 0, %s19
    %s22 = sphi 0, %s20
    %s23 = sphi 0, %s21
    %s35 = sphi 0, %s37
    %s38 = sphi 0, %s35
    %s39 = sphi 0, %s38
    %s55 = sphi 0, %s39
    %s59 = sphi 0, %s59
    %s61 = sphi 0, %s59
    %s62 = sphi 0, %s61
    %s76 = sphi 0, %s62
    %s80 = sphi 0, %s80
    %s82 = sphi 0, %s80
    %s83 = sphi 0, %s82
    %s97 = sphi 0, %s83
    %s101 = sphi 0, %s101
    %s103 = sphi 0, %s101
    %s104 = sphi 0, %s103
    %s118 = sphi 0, %s104
    %s122 = sphi 0, %s122
    %s124 = sphi 0, %s122
    %s125 = sphi 0, %s124
    %s139 = sphi 0, %s125
    %s147 = sphi 0, %s149
    %s150 = sphi 0, %s147
    %s151 = sphi 0, %s150
    %s167 = sphi 0, %s151
  $region4: #{complex_conv2d_encoder.1} parent=0 // loop_header_branch
    %14 = sbr.rel (%p12) target = $region8
  $region5: #{complex_conv2d_encoder.1} parent=0 // loop_body
    %s16 = ssub.s32 %s11, 1
    %s17 = ssub.s32 %s11, 2
    %s24 = sadd.s32 1, %s19
    %p25 = scmp.ge.s32.totalorder %s24, 1
    %s26 = scalar_select %p25, 0, %s24
    %s27 = sadd.s32 1, %s18
    %s28 = scalar_select %p25, %s27, %s18
    %p29 = scmp.ge.s32.totalorder %s28, 2
    %s30 = scalar_select %p29, 0, %s28
    %s31 = ssub.s32 %s18, %s30
    %s32 = ssub.s32 %s19, %s26
    %s33 = sor.u32 %s31, %s32
    %p34 = scmp.eq.s32.totalorder %s33, 0
    %s36 = sadd.s32 %s35, 1
    %s37 = scalar_select %p34, %s35, %s36
    %p40 = pneg %p34
    %p41 = scmp.eq.s32.totalorder %s11, 1
    %p42 = por %p40, %p41
    %p43 = scmp.ne.s32.totalorder %s35, %s38
    %p44 = scmp.eq.s32.totalorder %s11, 0
    %p45 = por %p43, %p44
    %p46 = scmp.ne.s32.totalorder %s35, %s38
    %p47 = scmp.eq.s32.totalorder %s16, 1
    %p48 = por %p46, %p47
    %p49 = scmp.ne.s32.totalorder %s38, %s39
    %p50 = scmp.eq.s32.totalorder %s16, 0
    %p51 = por %p49, %p50
    %p52 = scmp.ne.s32.totalorder %s38, %s39
    %p53 = scmp.eq.s32.totalorder %s17, 1
    %p54 = por %p52, %p53
    %p56 = scmp.ne.s32.totalorder %s39, %s55
    %p57 = scmp.eq.s32.totalorder %s17, 0
    %p58 = por %p56, %p57
    %s60 = sadd.s32 %s59, 1
    %p63 = scmp.eq.s32.totalorder %s11, 1
    %p64 = scmp.ne.s32.totalorder %s59, %s61
    %p65 = scmp.eq.s32.totalorder %s11, 0
    %p66 = por %p64, %p65
    %p67 = scmp.ne.s32.totalorder %s59, %s61
    %p68 = scmp.eq.s32.totalorder %s16, 1
    %p69 = por %p67, %p68
    %p70 = scmp.ne.s32.totalorder %s61, %s62
    %p71 = scmp.eq.s32.totalorder %s16, 0
    %p72 = por %p70, %p71
    %p73 = scmp.ne.s32.totalorder %s61, %s62
    %p74 = scmp.eq.s32.totalorder %s17, 1
    %p75 = por %p73, %p74
    %p77 = scmp.ne.s32.totalorder %s62, %s76
    %p78 = scmp.eq.s32.totalorder %s17, 0
    %p79 = por %p77, %p78
    %s81 = sadd.s32 %s80, 1
    %p84 = scmp.eq.s32.totalorder %s11, 1
    %p85 = scmp.ne.s32.totalorder %s80, %s82
    %p86 = scmp.eq.s32.totalorder %s11, 0
    %p87 = por %p85, %p86
    %p88 = scmp.ne.s32.totalorder %s80, %s82
    %p89 = scmp.eq.s32.totalorder %s16, 1
    %p90 = por %p88, %p89
    %p91 = scmp.ne.s32.totalorder %s82, %s83
    %p92 = scmp.eq.s32.totalorder %s16, 0
    %p93 = por %p91, %p92
    %p94 = scmp.ne.s32.totalorder %s82, %s83
    %p95 = scmp.eq.s32.totalorder %s17, 1
    %p96 = por %p94, %p95
    %p98 = scmp.ne.s32.totalorder %s83, %s97
    %p99 = scmp.eq.s32.totalorder %s17, 0
    %p100 = por %p98, %p99
    %s102 = sadd.s32 %s101, 1
    %p105 = scmp.eq.s32.totalorder %s11, 1
    %p106 = scmp.ne.s32.totalorder %s101, %s103
    %p107 = scmp.eq.s32.totalorder %s11, 0
    %p108 = por %p106, %p107
    %p109 = scmp.ne.s32.totalorder %s101, %s103
    %p110 = scmp.eq.s32.totalorder %s16, 1
    %p111 = por %p109, %p110
    %p112 = scmp.ne.s32.totalorder %s103, %s104
    %p113 = scmp.eq.s32.totalorder %s16, 0
    %p114 = por %p112, %p113
    %p115 = scmp.ne.s32.totalorder %s103, %s104
    %p116 = scmp.eq.s32.totalorder %s17, 1
    %p117 = por %p115, %p116
    %p119 = scmp.ne.s32.totalorder %s104, %s118
    %p120 = scmp.eq.s32.totalorder %s17, 0
    %p121 = por %p119, %p120
    %s123 = sadd.s32 %s122, 1
    %p126 = scmp.eq.s32.totalorder %s11, 1
    %p127 = scmp.ne.s32.totalorder %s122, %s124
    %p128 = scmp.eq.s32.totalorder %s11, 0
    %p129 = por %p127, %p128
    %p130 = scmp.ne.s32.totalorder %s122, %s124
    %p131 = scmp.eq.s32.totalorder %s16, 1
    %p132 = por %p130, %p131
    %p133 = scmp.ne.s32.totalorder %s124, %s125
    %p134 = scmp.eq.s32.totalorder %s16, 0
    %p135 = por %p133, %p134
    %p136 = scmp.ne.s32.totalorder %s124, %s125
    %p137 = scmp.eq.s32.totalorder %s17, 1
    %p138 = por %p136, %p137
    %p140 = scmp.ne.s32.totalorder %s125, %s139
    %p141 = scmp.eq.s32.totalorder %s17, 0
    %p142 = por %p140, %p141
    %s143 = ssub.s32 %s18, %s30
    %s144 = ssub.s32 %s19, %s26
    %s145 = sor.u32 %s143, %s144
    %p146 = scmp.eq.s32.totalorder %s145, 0
    %s148 = sadd.s32 %s147, 1
    %s149 = scalar_select %p146, %s147, %s148
    %p152 = pneg %p146
    %p153 = scmp.eq.s32.totalorder %s11, 1
    %p154 = por %p152, %p153
    %p155 = scmp.ne.s32.totalorder %s147, %s150
    %p156 = scmp.eq.s32.totalorder %s11, 0
    %p157 = por %p155, %p156
    %p158 = scmp.ne.s32.totalorder %s147, %s150
    %p159 = scmp.eq.s32.totalorder %s16, 1
    %p160 = por %p158, %p159
    %p161 = scmp.ne.s32.totalorder %s150, %s151
    %p162 = scmp.eq.s32.totalorder %s16, 0
    %p163 = por %p161, %p162
    %p164 = scmp.ne.s32.totalorder %s150, %s151
    %p165 = scmp.eq.s32.totalorder %s17, 1
    %p166 = por %p164, %p165
    %p168 = scmp.ne.s32.totalorder %s151, %s167
    %p169 = scmp.eq.s32.totalorder %s17, 0
    %p170 = por %p168, %p169
    %p171 = scmp.le.s32.totalorder 1, %s11
    %p172 = scmp.lt.s32.totalorder %s11, 3
    %p173 = pnand %p171, %p172
    %p174 = pneg %p173
    // Predicated region
    $region9: #{complex_conv2d_encoder.1} parent=5 // pred_check
      _
    $region10: #{complex_conv2d_encoder.1} parent=5 // pred_check_branch
      %176 = sbr.rel (%p173) target = $region12
    $region11: #{complex_conv2d_encoder.1} parent=5 // pred_region
      %s177 = ssub.s32 %s11, 1
      // Predicated region
      $region13: #{complex_conv2d_encoder.1} parent=11 // pred_check
        %p178 = pneg %p72
      $region14: #{complex_conv2d_encoder.1} parent=11 // pred_check_branch
        %180 = sbr.rel (%p178) target = $region16
      $region15: #{complex_conv2d_encoder.1} parent=11 // pred_region
        _
      $region16: #{complex_conv2d_encoder.1} parent=11 // pred_fallthru
        _
      // Predicated region
      $region17: #{complex_conv2d_encoder.1} parent=11 // pred_check
        %p181 = pneg %p93
      $region18: #{complex_conv2d_encoder.1} parent=11 // pred_check_branch
        %183 = sbr.rel (%p181) target = $region20
      $region19: #{complex_conv2d_encoder.1} parent=11 // pred_region
        _
      $region20: #{complex_conv2d_encoder.1} parent=11 // pred_fallthru
        _
      // Predicated region
      $region21: #{complex_conv2d_encoder.1} parent=11 // pred_check
        %p184 = pneg %p114
      $region22: #{complex_conv2d_encoder.1} parent=11 // pred_check_branch
        %186 = sbr.rel (%p184) target = $region24
      $region23: #{complex_conv2d_encoder.1} parent=11 // pred_region
        _
      $region24: #{complex_conv2d_encoder.1} parent=11 // pred_fallthru
        _
      // Predicated region
      $region25: #{complex_conv2d_encoder.1} parent=11 // pred_check
        %p187 = pneg %p135
      $region26: #{complex_conv2d_encoder.1} parent=11 // pred_check_branch
        %189 = sbr.rel (%p187) target = $region28
      $region27: #{complex_conv2d_encoder.1} parent=11 // pred_region
        _
      $region28: #{complex_conv2d_encoder.1} parent=11 // pred_fallthru
        _
    $region12: #{complex_conv2d_encoder.1} parent=5 // pred_fallthru
      _
    %p190 = scmp.lt.s32.totalorder %s11, 2
    // Predicated region
    $region29: #{complex_conv2d_encoder.1} parent=5 // pred_check
      %p191 = pneg %p190
    $region30: #{complex_conv2d_encoder.1} parent=5 // pred_check_branch
      %193 = sbr.rel (%p191) target = $region32
    $region31: #{complex_conv2d_encoder.1} parent=5 // pred_region
      // Predicated region
      $region33: #{complex_conv2d_encoder.1} parent=31 // pred_check
        %p194 = pneg %p45
      $region34: #{complex_conv2d_encoder.1} parent=31 // pred_check_branch
        %196 = sbr.rel (%p194) target = $region36
      $region35: #{complex_conv2d_encoder.1} parent=31 // pred_region
        %s197 = smul.u32 4, %s19
        %p198 = scmp.lt.s32.totalorder %s18, 1
        %s199 = scalar_select %p198, %s18, 1
        %p200 = scmp.lt.s32.totalorder %s197, 3
        %s201 = scalar_select %p200, %s197, 3
        %s202 = smul.addr %s199, 4
        %s203 = sadd.s32 %s201, %s202
        %s204 = smul.addr %s203, 4
        %s205 = scalar_lea.vmem %s0, %s204
        %s206 = smul.u32 4, %s19
      $region36: #{complex_conv2d_encoder.1} parent=31 // pred_fallthru
        _
    $region32: #{complex_conv2d_encoder.1} parent=5 // pred_fallthru
      _
    %p207 = scmp.le.s32.totalorder 1, %s11
    %p208 = scmp.lt.s32.totalorder %s11, 3
    %p209 = pnand %p207, %p208
    %p210 = pneg %p209
    // Predicated region
    $region37: #{complex_conv2d_encoder.1} parent=5 // pred_check
      _
    $region38: #{complex_conv2d_encoder.1} parent=5 // pred_check_branch
      %212 = sbr.rel (%p209) target = $region40
    $region39: #{complex_conv2d_encoder.1} parent=5 // pred_region
      %s213 = ssub.s32 %s11, 1
      %s214 = smul.u32 4, %s21
      %p215 = scmp.lt.s32.totalorder %s20, 1
      %s216 = scalar_select %p215, %s20, 1
      %p217 = scmp.lt.s32.totalorder %s214, 3
      %s218 = scalar_select %p217, %s214, 3
      %s219 = smul.addr %s216, 4
      %s220 = sadd.s32 %s218, %s219
      %s221 = smul.addr %s220, 4
      %s222 = scalar_lea.vmem %s0, %s221
      %p223 = pneg %p51
      %p224 = pneg %p48
      %p225 = pneg %p72
      %p226 = pneg %p69
      %p227 = pneg %p93
      %p228 = pneg %p90
      %p229 = pneg %p114
      %p230 = pneg %p111
      %p231 = pneg %p135
      %p232 = pneg %p132
      %p233 = pneg %p163
      %p234 = pneg %p160
      %s235 = smul.u32 4, %s21
      %p236 = scmp.lt.s32.totalorder %s20, 1
      %s237 = scalar_select %p236, %s20, 1
      %p238 = scmp.lt.s32.totalorder %s235, 3
      %s239 = scalar_select %p238, %s235, 3
      %s240 = smul.addr %s237, 4
      %s241 = sadd.s32 %s239, %s240
      %s242 = smul.addr %s241, 8
      %s243 = scalar_lea.vmem %s5, %s242
      %s244 = smul.u32 4, %s21
      %p245 = scmp.lt.s32.totalorder %s20, 1
      %s246 = scalar_select %p245, %s20, 1
      %p247 = scmp.lt.s32.totalorder %s244, 3
      %s248 = scalar_select %p247, %s244, 3
      %s249 = smul.addr %s246, 4
      %s250 = sadd.s32 %s248, %s249
      %s251 = smul.addr %s250, 4
      %s252 = scalar_lea.vmem %s0, %s251
      %s253 = smul.u32 4, %s21
      %s254 = smul.u32 4, %s21
      %p255 = scmp.lt.s32.totalorder %s20, 1
      %s256 = scalar_select %p255, %s20, 1
      %p257 = scmp.lt.s32.totalorder %s254, 3
      %s258 = scalar_select %p257, %s254, 3
      %s259 = smul.addr %s256, 4
      %s260 = sadd.s32 %s258, %s259
      %s261 = smul.addr %s260, 8
      %s262 = scalar_lea.vmem %s5, %s261
      %s263 = smul.u32 4, %s21
      %v264 = vld [vmem:[%s252] sm:$0xff]
      %v265 = vld [vmem:[%s252 + $0x8] sm:$0xff]
      %268 = vst [vmem:[#allocation1] ss:$2 sm:$0xff] %v264
      %s269 = scalar_lea.vmem [#allocation1], 16
      %270 = vst [vmem:[%s269] ss:$2 sm:$0xff] %v265
      %v271 = vld.sshfl [vmem:[#allocation1] sm:$0xff pattern:$0x75316420]
      %v272 = vld.sshfl [vmem:[#allocation1 + $0x8] sm:$0xff pattern:$0x75316420]
      %v273 = vld.sshfl [vmem:[#allocation1 + $0x10] sm:$0xff pattern:$0x75316420]
      %v274 = vld.sshfl [vmem:[#allocation1 + $0x18] sm:$0xff pattern:$0x75316420]
      %279 = vrot.lane.b32.xlu0 %v271, 127
      %v280 = vpop.permute.xlu0 %279
      %281 = vrot.lane.b32.xlu0 %v272, 127
      %v282 = vpop.permute.xlu0 %281
      %283 = vrot.lane.b32.xlu0 %v273, 127
      %v284 = vpop.permute.xlu0 %283
      %285 = vrot.lane.b32.xlu0 %v274, 127
      %v286 = vpop.permute.xlu0 %285
      %v287 = vlaneseq
      %v288 = vand.u32 %v287, 127
      %vm289 = vcmp.lt.s32.totalorder %v288, 127
      %v290 = vsel %vm289, %v284, %v286
      %v291 = vsel %vm289, %v282, %v284
      %v292 = vsel %vm289, %v280, %v282
      %v293 = vsel %vm289, %v286, %v280
      %294 = vst [vmem:[#allocation1] ss:$2 sm:$0xff] %v264
      %s295 = scalar_lea.vmem [#allocation1], 16
      %296 = vst [vmem:[%s295] ss:$2 sm:$0xff] %v265
      %v297 = vld.sshfl [vmem:[#allocation1] sm:$0xff pattern:$0x75316420]
      %v298 = vld.sshfl [vmem:[#allocation1 + $0x8] sm:$0xff pattern:$0x75316420]
      %v299 = vld.sshfl [vmem:[#allocation1 + $0x10] sm:$0xff pattern:$0x75316420]
      %v300 = vld.sshfl [vmem:[#allocation1 + $0x18] sm:$0xff pattern:$0x75316420]
      %305 = vrot.lane.b32.xlu0 %v297, 1
      %v306 = vpop.permute.xlu0 %305
      %307 = vrot.lane.b32.xlu0 %v298, 1
      %v308 = vpop.permute.xlu0 %307
      %309 = vrot.lane.b32.xlu0 %v299, 1
      %v310 = vpop.permute.xlu0 %309
      %311 = vrot.lane.b32.xlu0 %v300, 1
      %v312 = vpop.permute.xlu0 %311
      %vm313 = vcmp.lt.s32.totalorder %v288, 1
      %v314 = vsel %vm313, %v310, %v312
      %v315 = vsel %vm313, %v308, %v310
      %v316 = vsel %vm313, %v306, %v308
      %v317 = vsel %vm313, %v312, %v306
      %v318 = vadd.s32 %v288, 128
      %v319 = vadd.s32 %v288, 256
      %v320 = vadd.s32 %v288, 384
      %v321 = vand.u32 %v288, 1
      %v322 = vand.u32 %v318, 1
      %v323 = vand.u32 %v319, 1
      %v324 = vand.u32 %v320, 1
      %vm325 = vcmp.eq.s32.totalorder %v321, 0
      %vm326 = vcmp.eq.s32.totalorder %v322, 0
      %vm327 = vcmp.eq.s32.totalorder %v323, 0
      %vm328 = vcmp.eq.s32.totalorder %v324, 0
      %v329 = vsub.f32 0.0, %v292
      %v330 = vsub.f32 0.0, %v291
      %v331 = vsub.f32 0.0, %v290
      %v332 = vsub.f32 0.0, %v293
      %v333 = vsel %vm325, %v329, %v317
      %v334 = vsel %vm326, %v330, %v316
      %v335 = vsel %vm327, %v331, %v315
      %v336 = vsel %vm328, %v332, %v314
      %v337 = vld [vmem:[%s1] sm:$0xff]
      %v338 = vld [vmem:[%s2] sm:$0xff]
      %vm339 = vcmask 31744
      %v341 = vsel %vm339, %v338, 0
      %vm343 = vcmask 1043456
      %v345 = vsel %vm343, %v333, 0
      %v348 = vsel %vm343, %v334, 0
      %v351 = vsel %vm343, %v335, 0
      %v354 = vsel %vm343, %v336, 0
      %356 = vmatpush.msra.mxu0 0.0
      %357 = vmatpush.msra.mxu0 0.0
      %358 = vmatpush.msra.mxu0 0.0
      %359 = vmatpush.msra.mxu0 0.0
      %360 = vmatpush.msra.mxu0 0.0
      %361 = vmatpush.msra.mxu0 0.0
      %362 = vmatpush.msra.mxu0 0.0
      %363 = vmatpush.msra.mxu0 0.0
      %364 = vmatpush.msra.mxu0 0.0
      %365 = vmatpush.msra.mxu0 0.0
      %366 = vmatpush.msra.mxu0 0.0
      %367 = vmatpush.msra.mxu0 0.0
      %368 = vmatpush.msra.mxu0 0.0
      %369 = vmatpush.msra.mxu0 0.0
      %370 = vmatpush.msra.mxu0 0.0
      %371 = vmatpush.msra.mxu0 %v345
      %372 = vmatmul.f32.gmra.mxu0 %v341
      %v373 = vpop.f32.mrf.mxu0
      %v374 = vadd.f32 0.0, %v373
      %375 = vdwg.mxu0
      %376 = vmatpush.msra.mxu0 0.0
      %377 = vmatpush.msra.mxu0 0.0
      %378 = vmatpush.msra.mxu0 0.0
      %379 = vmatpush.msra.mxu0 0.0
      %380 = vmatpush.msra.mxu0 0.0
      %381 = vmatpush.msra.mxu0 0.0
      %382 = vmatpush.msra.mxu0 0.0
      %383 = vmatpush.msra.mxu0 0.0
      %384 = vmatpush.msra.mxu0 0.0
      %385 = vmatpush.msra.mxu0 0.0
      %386 = vmatpush.msra.mxu0 0.0
      %387 = vmatpush.msra.mxu0 0.0
      %388 = vmatpush.msra.mxu0 0.0
      %389 = vmatpush.msra.mxu0 0.0
      %390 = vmatpush.msra.mxu0 0.0
      %391 = vmatpush.msra.mxu0 %v348
      %392 = vmatmul.f32.gmra.mxu0 %v341
      %v393 = vpop.f32.mrf.mxu0
      %v394 = vadd.f32 0.0, %v393
      %395 = vdwg.mxu0
      %396 = vmatpush.msra.mxu0 0.0
      %397 = vmatpush.msra.mxu0 0.0
      %398 = vmatpush.msra.mxu0 0.0
      %399 = vmatpush.msra.mxu0 0.0
      %400 = vmatpush.msra.mxu0 0.0
      %401 = vmatpush.msra.mxu0 0.0
      %402 = vmatpush.msra.mxu0 0.0
      %403 = vmatpush.msra.mxu0 0.0
      %404 = vmatpush.msra.mxu0 0.0
      %405 = vmatpush.msra.mxu0 0.0
      %406 = vmatpush.msra.mxu0 0.0
      %407 = vmatpush.msra.mxu0 0.0
      %408 = vmatpush.msra.mxu0 0.0
      %409 = vmatpush.msra.mxu0 0.0
      %410 = vmatpush.msra.mxu0 0.0
      %411 = vmatpush.msra.mxu0 %v351
      %412 = vmatmul.f32.gmra.mxu0 %v341
      %v413 = vpop.f32.mrf.mxu0
      %v414 = vadd.f32 0.0, %v413
      %415 = vdwg.mxu0
      %416 = vmatpush.msra.mxu0 0.0
      %417 = vmatpush.msra.mxu0 0.0
      %418 = vmatpush.msra.mxu0 0.0
      %419 = vmatpush.msra.mxu0 0.0
      %420 = vmatpush.msra.mxu0 0.0
      %421 = vmatpush.msra.mxu0 0.0
      %422 = vmatpush.msra.mxu0 0.0
      %423 = vmatpush.msra.mxu0 0.0
      %424 = vmatpush.msra.mxu0 0.0
      %425 = vmatpush.msra.mxu0 0.0
      %426 = vmatpush.msra.mxu0 0.0
      %427 = vmatpush.msra.mxu0 0.0
      %428 = vmatpush.msra.mxu0 0.0
      %429 = vmatpush.msra.mxu0 0.0
      %430 = vmatpush.msra.mxu0 0.0
      %431 = vmatpush.msra.mxu0 %v354
      %432 = vmatmul.f32.gmra.mxu0 %v341
      %v433 = vpop.f32.mrf.mxu0
      %v434 = vadd.f32 0.0, %v433
      %435 = vdwg.mxu0
      %436 = vst [vmem:[#allocation1] ss:$2 sm:$0xff] %v264
      %s437 = scalar_lea.vmem [#allocation1], 16
      %438 = vst [vmem:[%s437] ss:$2 sm:$0xff] %v265
      %v439 = vld.sshfl [vmem:[#allocation1] sm:$0xff pattern:$0x75316420]
      %v440 = vld.sshfl [vmem:[#allocation1 + $0x8] sm:$0xff pattern:$0x75316420]
      %v441 = vld.sshfl [vmem:[#allocation1 + $0x10] sm:$0xff pattern:$0x75316420]
      %v442 = vld.sshfl [vmem:[#allocation1 + $0x18] sm:$0xff pattern:$0x75316420]
      %v444 = vsel %vm339, %v337, 0
      %v446 = vsel %vm343, %v439, 0
      %v448 = vsel %vm343, %v440, 0
      %v450 = vsel %vm343, %v441, 0
      %v452 = vsel %vm343, %v442, 0
      %454 = vmatpush.msra.mxu0 0.0
      %455 = vmatpush.msra.mxu0 0.0
      %456 = vmatpush.msra.mxu0 0.0
      %457 = vmatpush.msra.mxu0 0.0
      %458 = vmatpush.msra.mxu0 0.0
      %459 = vmatpush.msra.mxu0 0.0
      %460 = vmatpush.msra.mxu0 0.0
      %461 = vmatpush.msra.mxu0 0.0
      %462 = vmatpush.msra.mxu0 0.0
      %463 = vmatpush.msra.mxu0 0.0
      %464 = vmatpush.msra.mxu0 0.0
      %465 = vmatpush.msra.mxu0 0.0
      %466 = vmatpush.msra.mxu0 0.0
      %467 = vmatpush.msra.mxu0 0.0
      %468 = vmatpush.msra.mxu0 0.0
      %469 = vmatpush.msra.mxu0 %v446
      %470 = vmatmul.f32.gmra.mxu0 %v444
      %v471 = vpop.f32.mrf.mxu0
      %v472 = vadd.f32 %v374, %v471
      %473 = vdwg.mxu0
      %474 = vmatpush.msra.mxu0 0.0
      %475 = vmatpush.msra.mxu0 0.0
      %476 = vmatpush.msra.mxu0 0.0
      %477 = vmatpush.msra.mxu0 0.0
      %478 = vmatpush.msra.mxu0 0.0
      %479 = vmatpush.msra.mxu0 0.0
      %480 = vmatpush.msra.mxu0 0.0
      %481 = vmatpush.msra.mxu0 0.0
      %482 = vmatpush.msra.mxu0 0.0
      %483 = vmatpush.msra.mxu0 0.0
      %484 = vmatpush.msra.mxu0 0.0
      %485 = vmatpush.msra.mxu0 0.0
      %486 = vmatpush.msra.mxu0 0.0
      %487 = vmatpush.msra.mxu0 0.0
      %488 = vmatpush.msra.mxu0 0.0
      %489 = vmatpush.msra.mxu0 %v448
      %490 = vmatmul.f32.gmra.mxu0 %v444
      %v491 = vpop.f32.mrf.mxu0
      %v492 = vadd.f32 %v394, %v491
      %493 = vdwg.mxu0
      %494 = vmatpush.msra.mxu0 0.0
      %495 = vmatpush.msra.mxu0 0.0
      %496 = vmatpush.msra.mxu0 0.0
      %497 = vmatpush.msra.mxu0 0.0
      %498 = vmatpush.msra.mxu0 0.0
      %499 = vmatpush.msra.mxu0 0.0
      %500 = vmatpush.msra.mxu0 0.0
      %501 = vmatpush.msra.mxu0 0.0
      %502 = vmatpush.msra.mxu0 0.0
      %503 = vmatpush.msra.mxu0 0.0
      %504 = vmatpush.msra.mxu0 0.0
      %505 = vmatpush.msra.mxu0 0.0
      %506 = vmatpush.msra.mxu0 0.0
      %507 = vmatpush.msra.mxu0 0.0
      %508 = vmatpush.msra.mxu0 0.0
      %509 = vmatpush.msra.mxu0 %v450
      %510 = vmatmul.f32.gmra.mxu0 %v444
      %v511 = vpop.f32.mrf.mxu0
      %v512 = vadd.f32 %v414, %v511
      %513 = vdwg.mxu0
      %514 = vmatpush.msra.mxu0 0.0
      %515 = vmatpush.msra.mxu0 0.0
      %516 = vmatpush.msra.mxu0 0.0
      %517 = vmatpush.msra.mxu0 0.0
      %518 = vmatpush.msra.mxu0 0.0
      %519 = vmatpush.msra.mxu0 0.0
      %520 = vmatpush.msra.mxu0 0.0
      %521 = vmatpush.msra.mxu0 0.0
      %522 = vmatpush.msra.mxu0 0.0
      %523 = vmatpush.msra.mxu0 0.0
      %524 = vmatpush.msra.mxu0 0.0
      %525 = vmatpush.msra.mxu0 0.0
      %526 = vmatpush.msra.mxu0 0.0
      %527 = vmatpush.msra.mxu0 0.0
      %528 = vmatpush.msra.mxu0 0.0
      %529 = vmatpush.msra.mxu0 %v452
      %530 = vmatmul.f32.gmra.mxu0 %v444
      %v531 = vpop.f32.mrf.mxu0
      %v532 = vadd.f32 %v434, %v531
      %533 = vdwg.mxu0
      %v534 = vld [vmem:[%s3] sm:$0xff]
      %v535 = vld [vmem:[%s4] sm:$0xff]
      %537 = vset.pattern.permute.xlu0 0
      %538 = vperm.xlu0 %537, %v534
      %v539 = vpop.permute.xlu0 %538
      %542 = vset.pattern.permute.xlu0 0
      %543 = vperm.xlu0 %542, %v535
      %v544 = vpop.permute.xlu0 %543
      %v546 = vsel %vm325, %v539, %v544
      %v547 = vsel %vm326, %v539, %v544
      %v548 = vsel %vm327, %v539, %v544
      %v549 = vsel %vm328, %v539, %v544
      %v550 = vadd.f32 %v472, %v546
      %v551 = vadd.f32 %v492, %v547
      %v552 = vadd.f32 %v512, %v548
      %v553 = vadd.f32 %v532, %v549
      %554 = vst [vmem:[%s262] sm:$0xff] %v550
      %555 = vst [vmem:[%s262 + $0x8] sm:$0xff] %v551
      %556 = vst [vmem:[%s262 + $0x10] sm:$0xff] %v552
      %557 = vst [vmem:[%s262 + $0x18] sm:$0xff] %v553
      %s558 = smul.u32 4, %s21
      %p559 = scmp.lt.s32.totalorder %s20, 1
      %s560 = scalar_select %p559, %s20, 1
      %p561 = scmp.lt.s32.totalorder %s558, 3
      %s562 = scalar_select %p561, %s558, 3
      %s563 = smul.addr %s560, 4
      %s564 = sadd.s32 %s562, %s563
      %s565 = smul.addr %s564, 8
      %s566 = scalar_lea.vmem %s5, %s565
      // Predicated region
      $region41: #{complex_conv2d_encoder.1} parent=39 // pred_check
        %p567 = pneg %p160
      $region42: #{complex_conv2d_encoder.1} parent=39 // pred_check_branch
        %569 = sbr.rel (%p567) target = $region44
      $region43: #{complex_conv2d_encoder.1} parent=39 // pred_region
        %s570 = smul.u32 4, %s21
      $region44: #{complex_conv2d_encoder.1} parent=39 // pred_fallthru
        _
    $region40: #{complex_conv2d_encoder.1} parent=5 // pred_fallthru
      _
    %p571 = scmp.le.s32.totalorder 2, %s11
    // Predicated region
    $region45: #{complex_conv2d_encoder.1} parent=5 // pred_check
      %p572 = pneg %p571
    $region46: #{complex_conv2d_encoder.1} parent=5 // pred_check_branch
      %574 = sbr.rel (%p572) target = $region48
    $region47: #{complex_conv2d_encoder.1} parent=5 // pred_region
      %s575 = ssub.s32 %s11, 2
      // Predicated region
      $region49: #{complex_conv2d_encoder.1} parent=47 // pred_check
        %p576 = pneg %p166
      $region50: #{complex_conv2d_encoder.1} parent=47 // pred_check_branch
        %578 = sbr.rel (%p576) target = $region52
      $region51: #{complex_conv2d_encoder.1} parent=47 // pred_region
        %s579 = smul.u32 4, %s23
        %p580 = scmp.lt.s32.totalorder %s22, 1
        %s581 = scalar_select %p580, %s22, 1
        %p582 = scmp.lt.s32.totalorder %s579, 3
        %s583 = scalar_select %p582, %s579, 3
        %s584 = smul.addr %s581, 4
        %s585 = sadd.s32 %s583, %s584
        %s586 = smul.addr %s585, 8
        %s587 = scalar_lea.vmem %s5, %s586
      $region52: #{complex_conv2d_encoder.1} parent=47 // pred_fallthru
        _
    $region48: #{complex_conv2d_encoder.1} parent=5 // pred_fallthru
      _
  $region6: #{complex_conv2d_encoder.1} parent=0 // loop_footer
    %s15 = sadd.s32 1, %s11
  $region7: #{complex_conv2d_encoder.1} parent=0 // loop_footer_branch
    %10 = sbr.rel target = $region3
  $region8: #{complex_conv2d_encoder.1} parent=0 // loop_exit
    _

</llo_original>
